<compile_context>
chip_gen: v6e
topology: v6e:2x2x1
jax: 0.10.0
libtpu: 0.0.40
codegen_flags: <defaults>
</compile_context>

<pallas_src>
import jax
import jax.numpy as jnp
from jax import lax
from jax.experimental import pallas as pl
from jax.experimental.pallas import tpu as pltpu


# ---------------------------------------------------------------------------
# Small helpers
# ---------------------------------------------------------------------------
def _full_spec(arr):
    nd = arr.ndim
    return pl.BlockSpec(arr.shape, lambda *args: (0,) * nd)


def _pick_tile(hw_pad, pref):
    """Largest multiple of 128 <= pref that divides hw_pad (hw_pad % 128 == 0)."""
    pref = max(128, (int(pref) // 128) * 128)
    t = min(pref, hw_pad)
    while hw_pad % t != 0:
        t -= 128
    return t


# ---------------------------------------------------------------------------
# Projection kernel: x -> Q, K, V (bf16, channels-major), run once per position
# ---------------------------------------------------------------------------
def _make_projection_kernel(KC, VC):
    def kernel(x_ref, w1, b1, wq2, bq2, wk2, bk2, q_out, k_out, v_out):
        x = x_ref[0].astype(jnp.bfloat16)                               # (C, TP)
        # Fused stage-1 for q / k / v (value has no bias/BN/ReLU).
        h1 = (jnp.dot(w1[...], x, preferred_element_type=jnp.float32)
              + b1[...])                                                # (2KC+VC, TP)
        # NOTE: KC is expected to be a multiple of 8 so these row slices stay
        # sublane-aligned views (no VMEM copy).
        q1 = jnp.maximum(h1[:KC], 0.0).astype(jnp.bfloat16)             # (KC, TP)
        k1 = jnp.maximum(h1[KC:2 * KC], 0.0).astype(jnp.bfloat16)       # (KC, TP)
        v = h1[2 * KC:]                                                 # (VC, TP)
        # Stage-2 (BN folded; softmax scale folded into wq2/bq2).
        q = jnp.maximum(
            jnp.dot(wq2[...], q1, preferred_element_type=jnp.float32) + bq2[...],
            0.0)
        k = jnp.maximum(
            jnp.dot(wk2[...], k1, preferred_element_type=jnp.float32) + bk2[...],
            0.0)
        q_out[0] = q.astype(q_out.dtype)                                # lane-dense
        k_out[0] = k.astype(k_out.dtype)
        v_out[0] = v.astype(v_out.dtype)

    return kernel


def _projection_call(x, folded, KC, VC, TP):
    B, C, HW_pad = x.shape
    nt = HW_pad // TP
    wnames = ["w1", "b1", "wq2", "bq2", "wk2", "bk2"]
    wargs = [folded[n] for n in wnames]

    flops = int(B * HW_pad * (2 * C * (2 * KC + VC) + 4 * KC * KC))
    bytes_accessed = int(4 * x.size + 2 * B * (2 * KC + VC) * HW_pad
                         + sum(int(w.size) * w.dtype.itemsize for w in wargs))

    q, k, v = pl.pallas_call(
        _make_projection_kernel(KC, VC),
        out_shape=(jax.ShapeDtypeStruct((B, KC, HW_pad), jnp.bfloat16),
                   jax.ShapeDtypeStruct((B, KC, HW_pad), jnp.bfloat16),
                   jax.ShapeDtypeStruct((B, VC, HW_pad), jnp.bfloat16)),
        grid_spec=pltpu.PrefetchScalarGridSpec(
            num_scalar_prefetch=0,
            grid=(B, nt),
            in_specs=[pl.BlockSpec((1, C, TP), lambda b, t: (b, 0, t))]
                     + [_full_spec(a) for a in wargs],
            out_specs=[pl.BlockSpec((1, KC, TP), lambda b, t: (b, 0, t)),
                       pl.BlockSpec((1, KC, TP), lambda b, t: (b, 0, t)),
                       pl.BlockSpec((1, VC, TP), lambda b, t: (b, 0, t))]),
        compiler_params=pltpu.CompilerParams(
            dimension_semantics=("parallel", "parallel")),
        cost_estimate=pl.CostEstimate(flops=flops, transcendentals=0,
                                      bytes_accessed=bytes_accessed),
    )(x, *wargs)
    return q, k, v


# ---------------------------------------------------------------------------
# Attention kernels (single-pass softmax when nk == 1, flash otherwise)
# ---------------------------------------------------------------------------
def _make_attn_single_kernel(HW, HW_pad):
    needs_mask = HW_pad != HW

    def kernel(q_ref, k_ref, v_ref, ww, bw, o_ref):
        # q_ref: (1, KC, TQ) bf16, k_ref: (1, KC, TK) bf16, v_ref: (1, VC, TK) bf16
        s = lax.dot_general(q_ref[0], k_ref[0], (((0,), (0,)), ((), ())),
                            preferred_element_type=jnp.float32)         # (TQ, TK)
        if needs_mask:
            pos = lax.broadcasted_iota(jnp.int32, s.shape, 1)
            s = jnp.where(pos < HW, s, -jnp.inf)
        m = jnp.max(s, axis=-1, keepdims=True)
        p = jnp.exp(s - m)                                               # f32
        l = jnp.sum(p, axis=-1, keepdims=True)
        ctx = lax.dot_general(p.astype(jnp.bfloat16), v_ref[0],
                              (((1,), (1,)), ((), ())),
                              preferred_element_type=jnp.float32)        # (TQ, VC)
        ctx = ctx * pl.reciprocal(l, approx=True)
        out = jnp.maximum(
            lax.dot_general(ww[...], ctx.astype(jnp.bfloat16),
                            (((1,), (1,)), ((), ())),
                            preferred_element_type=jnp.float32) + bw[...],
            0.0)                                                         # (OUT_C, TQ)
        o_ref[0] = out.astype(o_ref.dtype)                               # lane-dense

    return kernel


def _make_attn_flash_kernel(HW, HW_pad, TK):
    needs_mask = HW_pad != HW

    def kernel(q_ref, k_ref, v_ref, ww, bw, o_ref, m_sc, l_sc, acc_sc):
        ki = pl.program_id(2)

        @pl.when(ki == 0)
        def _init():
            m_sc[...] = jnp.full_like(m_sc, -jnp.inf)
            l_sc[...] = jnp.zeros_like(l_sc)
            acc_sc[...] = jnp.zeros_like(acc_sc)

        s = lax.dot_general(q_ref[0], k_ref[0], (((0,), (0,)), ((), ())),
                            preferred_element_type=jnp.float32)          # (TQ, TK)
        if needs_mask:
            pos = ki * TK + lax.broadcasted_iota(jnp.int32, s.shape, 1)
            s = jnp.where(pos < HW, s, -jnp.inf)

        m_prev = m_sc[...]
        m_new = jnp.maximum(m_prev, jnp.max(s, axis=-1, keepdims=True))
        alpha = jnp.exp(m_prev - m_new)
        p = jnp.exp(s - m_new)                                            # f32
        l_sc[...] = alpha * l_sc[...] + jnp.sum(p, axis=-1, keepdims=True)
        ctx = lax.dot_general(p.astype(jnp.bfloat16), v_ref[0],
                              (((1,), (1,)), ((), ())),
                              preferred_element_type=jnp.float32)         # (TQ, VC)
        acc_sc[...] = alpha * acc_sc[...] + ctx
        m_sc[...] = m_new

        @pl.when(ki == pl.num_programs(2) - 1)
        def _fin():
            ctx_n = acc_sc[...] * pl.reciprocal(l_sc[...], approx=True)
            out = jnp.maximum(
                lax.dot_general(ww[...], ctx_n.astype(jnp.bfloat16),
                                (((1,), (1,)), ((), ())),
                                preferred_element_type=jnp.float32) + bw[...],
                0.0)                                                      # (OUT_C, TQ)
            o_ref[0] = out.astype(o_ref.dtype)

    return kernel


def _attention_call(q, k, v, ww, bw, OUT_C, HW, TQ, TK):
    B, KC, HW_pad = q.shape
    VC = v.shape[1]
    nq = HW_pad // TQ
    nk = HW_pad // TK

    flops = int(B * HW_pad * HW_pad * 2 * (KC + VC) + B * HW_pad * 2 * VC * OUT_C)
    transcend = int(B * HW_pad * HW_pad + B * HW_pad)
    bytes_accessed = int(2 * B * KC * HW_pad                    # Q (bf16)
                         + nq * 2 * B * (KC + VC) * HW_pad      # K/V re-read per q-tile
                         + 4 * B * OUT_C * HW_pad               # output (f32)
                         + int(ww.size) * 2 + int(bw.size) * 4)

    if nk == 1:
        kernel = _make_attn_single_kernel(HW, HW_pad)
        grid = (B, nq)
        in_specs = [pl.BlockSpec((1, KC, TQ), lambda b, qi: (b, 0, qi)),
                    pl.BlockSpec((1, KC, TK), lambda b, qi: (b, 0, 0)),
                    pl.BlockSpec((1, VC, TK), lambda b, qi: (b, 0, 0)),
                    _full_spec(ww), _full_spec(bw)]
        out_specs = pl.BlockSpec((1, OUT_C, TQ), lambda b, qi: (b, 0, qi))
        scratch = ()
        dims = ("parallel", "parallel")
    else:
        kernel = _make_attn_flash_kernel(HW, HW_pad, TK)
        grid = (B, nq, nk)
        in_specs = [pl.BlockSpec((1, KC, TQ), lambda b, qi, ki: (b, 0, qi)),
                    pl.BlockSpec((1, KC, TK), lambda b, qi, ki: (b, 0, ki)),
                    pl.BlockSpec((1, VC, TK), lambda b, qi, ki: (b, 0, ki)),
                    _full_spec(ww), _full_spec(bw)]
        out_specs = pl.BlockSpec((1, OUT_C, TQ), lambda b, qi, ki: (b, 0, qi))
        scratch = (pltpu.VMEM((TQ, 1), jnp.float32),    # running max
                   pltpu.VMEM((TQ, 1), jnp.float32),    # running sum
                   pltpu.VMEM((TQ, VC), jnp.float32))   # accumulator
        dims = ("parallel", "parallel", "arbitrary")

    return pl.pallas_call(
        kernel,
        out_shape=jax.ShapeDtypeStruct((B, OUT_C, HW_pad), jnp.float32),
        grid_spec=pltpu.PrefetchScalarGridSpec(
            num_scalar_prefetch=0,
            grid=grid,
            in_specs=in_specs,
            out_specs=out_specs,
            scratch_shapes=scratch),
        compiler_params=pltpu.CompilerParams(
            dimension_semantics=dims,
            vmem_limit_bytes=48 * 1024 * 1024),
        cost_estimate=pl.CostEstimate(flops=flops, transcendentals=transcend,
                                      bytes_accessed=bytes_accessed),
    )(q, k, v, ww, bw)


# ---------------------------------------------------------------------------
# Parameter folding (eval-mode BN folded into conv weights; bf16 weights)
# ---------------------------------------------------------------------------
def fold_params(p, key_c, eps=1e-5):
    def fold(w, bn):
        s = bn["gamma"] / jnp.sqrt(bn["var"] + eps)
        return w * s[:, None], (bn["beta"] - bn["mean"] * s)[:, None]

    wq1, bq1 = fold(p["wq1"], p["bnq1"])
    wq2, bq2 = fold(p["wq2"], p["bnq2"])
    scale = key_c ** (-0.5)            # fold softmax scale into the q path
    wq2 = wq2 * scale
    bq2 = bq2 * scale

    wk1, bk1 = fold(p["wk1"], p["bnk1"])
    wk2, bk2 = fold(p["wk2"], p["bnk2"])

    wv = p["wv"]                       # (VC, C), no bias / BN
    val_c = wv.shape[0]

    # Fused stage-1: rows = [q1 ; k1 ; v]
    w1 = jnp.concatenate([wq1, wk1, wv], axis=0)
    b1 = jnp.concatenate([bq1, bk1, jnp.zeros((val_c, 1), jnp.float32)], axis=0)

    ww, bw = fold(p["ww"], p["bnw"])

    bf = lambda a: a.astype(jnp.bfloat16)
    return dict(w1=bf(w1), b1=b1,
                wq2=bf(wq2), bq2=bq2,
                wk2=bf(wk2), bk2=bk2,
                ww=bf(ww), bw=bw)


# ---------------------------------------------------------------------------
# Wrapper
# ---------------------------------------------------------------------------
def self_attention_block_2d(x_nchw, params, key_channels, tq=256, tk=None):
    """x_nchw: (B, C, H, W) f32.  Returns (B, out_C, H, W) f32."""
    B, C, H, W = x_nchw.shape
    HW = H * W
    HW_pad = ((HW + 127) // 128) * 128

    KC = key_channels
    VC = params["wv"].shape[0]
    folded = fold_params(params, key_channels)
    OUT_C = folded["ww"].shape[0]

    # NCHW -> (B, C, HW): pure reshape (matches torch .view), pad HW to 128.
    x = x_nchw.reshape(B, C, HW)
    if HW_pad != HW:
        x = jnp.pad(x, ((0, 0), (0, 0), (0, HW_pad - HW)))

    # Projection pass: Q/K/V computed once per position, stored bf16.
    TP = _pick_tile(HW_pad, 512)
    q, k, v = _projection_call(x, folded, KC, VC, TP)

    # Attention pass.
    TQ = _pick_tile(HW_pad, tq)
    if tk is None:
        TK = HW_pad if HW_pad <= 2048 else _pick_tile(HW_pad, 512)
    else:
        TK = _pick_tile(HW_pad, tk)
    out = _attention_call(q, k, v, folded["ww"], folded["bw"], OUT_C, HW, TQ, TK)

    if HW_pad != HW:
        out = out[:, :, :HW]
    # (B, out_C, HW) is already channels-major: plain reshape to NCHW.
    return out.reshape(B, OUT_C, H, W)


# ---------------------------------------------------------------------------
# Deterministic synthetic parameters (raw conv weights + eval-mode BN stats)
# ---------------------------------------------------------------------------
class _KeyGen:
    def __init__(self, key):
        self._key = key

    def __call__(self):
        self._key, sub = jax.random.split(self._key)
        return sub


def init_params(key, in_c, key_c, val_c, out_c):
    kg = _KeyGen(key)

    def conv(cout, cin):               # stored (out, in) like torch conv1x1
        return 0.2 * jax.random.normal(kg(), (cout, cin), jnp.float32)

    def bn(c):
        return dict(
            gamma=1.0 + 0.1 * jax.random.normal(kg(), (c,), jnp.float32),
            beta=0.1 * jax.random.normal(kg(), (c,), jnp.float32),
            mean=0.05 * jax.random.normal(kg(), (c,), jnp.float32),
            var=1.0 + 0.1 * jax.random.uniform(kg(), (c,), jnp.float32),
        )

    return dict(
        wq1=conv(key_c, in_c), bnq1=bn(key_c),
        wq2=conv(key_c, key_c), bnq2=bn(key_c),
        wk1=conv(key_c, in_c), bnk1=bn(key_c),
        wk2=conv(key_c, key_c), bnk2=bn(key_c),
        wv=conv(val_c, in_c),
        ww=conv(out_c, val_c), bnw=bn(out_c),
    )


# ---------------------------------------------------------------------------
# Pure-JAX reference (mirrors the PyTorch forward, eval-mode BN, all f32)
# ---------------------------------------------------------------------------
def reference(x, p, key_c, eps=1e-5):
    B, C, H, W = x.shape

    def conv(h, w):
        return jnp.einsum("oc,bchw->bohw", w, h)

    def bnorm(h, bn):
        g, b, m, v = bn["gamma"], bn["beta"], bn["mean"], bn["var"]
        return ((h - m[None, :, None, None])
                / jnp.sqrt(v[None, :, None, None] + eps)
                * g[None, :, None, None] + b[None, :, None, None])

    def stage(h, w, bn):
        return jnp.maximum(bnorm(conv(h, w), bn), 0.0)

    query = stage(stage(x, p["wq1"], p["bnq1"]), p["wq2"], p["bnq2"])
    key_ = stage(stage(x, p["wk1"], p["bnk1"]), p["wk2"], p["bnk2"])
    value = conv(x, p["wv"])
    kc, vc = query.shape[1], value.shape[1]

    query = query.reshape(B, kc, H * W).transpose(0, 2, 1)   # (B, HW, KC)
    key_ = key_.reshape(B, kc, H * W)                        # (B, KC, HW)
    value = value.reshape(B, vc, H * W).transpose(0, 2, 1)   # (B, HW, VC)

    sim = jnp.einsum("bqc,bck->bqk", query, key_) * key_c ** (-0.5)
    sim = jax.nn.softmax(sim, axis=-1)
    ctx = jnp.einsum("bqk,bkv->bqv", sim, value)
    ctx = ctx.transpose(0, 2, 1).reshape(B, vc, H, W)
    return stage(ctx, p["ww"], p["bnw"])


if __name__ == "__main__":
    B, C, H, W = 2, 4, 16, 16
    KEY_C, VAL_C, OUT_C = 8, 8, 4

    root = jax.random.PRNGKey(0)
    k_x, k_p = jax.random.split(root)
    x = jax.random.normal(k_x, (B, C, H, W), jnp.float32)
    params = init_params(k_p, C, KEY_C, VAL_C, OUT_C)

    y_ref = reference(x, params, KEY_C)

    # Default path: TK == HW -> single-pass softmax kernel (nk == 1).
    y = jax.block_until_ready(self_attention_block_2d(x, params, KEY_C))
    assert y.shape == (B, OUT_C, H, W)
    # bf16 MXU operands (projections + attention) + approx reciprocal -> loose tol.
    max_err = float(jnp.max(jnp.abs(y - y_ref)))
    assert max_err < 5e-2, max_err

    # Also exercise the flash (online-softmax) path with multiple k-tiles.
    y2 = jax.block_until_ready(
        self_attention_block_2d(x, params, KEY_C, tq=128, tk=128))
    max_err2 = float(jnp.max(jnp.abs(y2 - y_ref)))
    assert max_err2 < 5e-2, max_err2

    print("KERNEL_OK")
</pallas_src>

<mosaic_0001>
module attributes {stable_mosaic.version = 11 : i64} {
  func.func @kernel(%arg0: i32, %arg1: i32, %arg2: memref<1x4x256xf32, #tpu.memory_space<vmem>>, %arg3: memref<24x4xbf16, #tpu.memory_space<vmem>>, %arg4: memref<24x1xf32, #tpu.memory_space<vmem>>, %arg5: memref<8x8xbf16, #tpu.memory_space<vmem>>, %arg6: memref<8x1xf32, #tpu.memory_space<vmem>>, %arg7: memref<8x8xbf16, #tpu.memory_space<vmem>>, %arg8: memref<8x1xf32, #tpu.memory_space<vmem>>, %arg9: memref<1x8x256xbf16, #tpu.memory_space<vmem>>, %arg10: memref<1x8x256xbf16, #tpu.memory_space<vmem>>, %arg11: memref<1x8x256xbf16, #tpu.memory_space<vmem>>) attributes {dimension_semantics = [#tpu.dimension_semantics<parallel>, #tpu.dimension_semantics<parallel>], iteration_bounds = array<i64: 2, 1>, scalar_prefetch = 0 : i64, scratch_operands = 0 : i64, tpu.core_type = #tpu.core_type<tc>, window_params = [{transform_indices = @transform_0, window_bounds = array<i64: 1, 4, 256>}, {pipeline_mode = #tpu.pipeline_mode<synchronous>, transform_indices = @transform_1, window_bounds = array<i64: 24, 4>}, {pipeline_mode = #tpu.pipeline_mode<synchronous>, transform_indices = @transform_2, window_bounds = array<i64: 24, 1>}, {pipeline_mode = #tpu.pipeline_mode<synchronous>, transform_indices = @transform_3, window_bounds = array<i64: 8, 8>}, {pipeline_mode = #tpu.pipeline_mode<synchronous>, transform_indices = @transform_4, window_bounds = array<i64: 8, 1>}, {pipeline_mode = #tpu.pipeline_mode<synchronous>, transform_indices = @transform_5, window_bounds = array<i64: 8, 8>}, {pipeline_mode = #tpu.pipeline_mode<synchronous>, transform_indices = @transform_6, window_bounds = array<i64: 8, 1>}, {transform_indices = @transform_7, window_bounds = array<i64: 1, 8, 256>}, {transform_indices = @transform_8, window_bounds = array<i64: 1, 8, 256>}, {transform_indices = @transform_9, window_bounds = array<i64: 1, 8, 256>}]} {
    %c0 = arith.constant 0 : index
    %c0_0 = arith.constant 0 : index
    %c0_1 = arith.constant 0 : index
    %0 = vector.load %arg2[%c0, %c0_0, %c0_1] : memref<1x4x256xf32, #tpu.memory_space<vmem>>, vector<1x4x256xf32>
    %1 = vector.shape_cast %0 : vector<1x4x256xf32> to vector<4x256xf32>
    %2 = arith.truncf %1 : vector<4x256xf32> to vector<4x256xbf16>
    %c0_2 = arith.constant 0 : index
    %c0_3 = arith.constant 0 : index
    %3 = vector.load %arg3[%c0_2, %c0_3] : memref<24x4xbf16, #tpu.memory_space<vmem>>, vector<24x4xbf16>
    %cst = arith.constant dense<0.000000e+00> : vector<24x256xf32>
    %4 = tpu.matmul %3, %2, %cst {dimension_numbers = #tpu.dot_dimension_numbers<[1], [0], [0], [1], [0, 0, 1, 1], [], []>} : vector<24x4xbf16>, vector<4x256xbf16>, vector<24x256xf32> -> vector<24x256xf32>
    %c0_4 = arith.constant 0 : index
    %c0_5 = arith.constant 0 : index
    %5 = vector.load %arg4[%c0_4, %c0_5] : memref<24x1xf32, #tpu.memory_space<vmem>>, vector<24x1xf32>
    %6 = vector.broadcast %5 : vector<24x1xf32> to vector<24x256xf32>
    %7 = arith.addf %4, %6 : vector<24x256xf32>
    %8 = vector.extract_strided_slice %7 {offsets = [0, 0], sizes = [8, 256], strides = [1, 1]} : vector<24x256xf32> to vector<8x256xf32>
    %cst_6 = arith.constant 0.000000e+00 : f32
    %9 = vector.broadcast %cst_6 : f32 to vector<8x256xf32>
    %10 = arith.maximumf %8, %9 : vector<8x256xf32>
    %11 = arith.truncf %10 : vector<8x256xf32> to vector<8x256xbf16>
    %12 = vector.extract_strided_slice %7 {offsets = [8, 0], sizes = [8, 256], strides = [1, 1]} : vector<24x256xf32> to vector<8x256xf32>
    %cst_7 = arith.constant 0.000000e+00 : f32
    %13 = vector.broadcast %cst_7 : f32 to vector<8x256xf32>
    %14 = arith.maximumf %12, %13 : vector<8x256xf32>
    %15 = arith.truncf %14 : vector<8x256xf32> to vector<8x256xbf16>
    %16 = vector.extract_strided_slice %7 {offsets = [16, 0], sizes = [8, 256], strides = [1, 1]} : vector<24x256xf32> to vector<8x256xf32>
    %c0_8 = arith.constant 0 : index
    %c0_9 = arith.constant 0 : index
    %17 = vector.load %arg5[%c0_8, %c0_9] : memref<8x8xbf16, #tpu.memory_space<vmem>>, vector<8x8xbf16>
    %cst_10 = arith.constant dense<0.000000e+00> : vector<8x256xf32>
    %18 = tpu.matmul %17, %11, %cst_10 {dimension_numbers = #tpu.dot_dimension_numbers<[1], [0], [0], [1], [0, 0, 1, 1], [], []>} : vector<8x8xbf16>, vector<8x256xbf16>, vector<8x256xf32> -> vector<8x256xf32>
    %c0_11 = arith.constant 0 : index
    %c0_12 = arith.constant 0 : index
    %19 = vector.load %arg6[%c0_11, %c0_12] : memref<8x1xf32, #tpu.memory_space<vmem>>, vector<8x1xf32>
    %20 = vector.broadcast %19 : vector<8x1xf32> to vector<8x256xf32>
    %21 = arith.addf %18, %20 : vector<8x256xf32>
    %cst_13 = arith.constant 0.000000e+00 : f32
    %22 = vector.broadcast %cst_13 : f32 to vector<8x256xf32>
    %23 = arith.maximumf %21, %22 : vector<8x256xf32>
    %c0_14 = arith.constant 0 : index
    %c0_15 = arith.constant 0 : index
    %24 = vector.load %arg7[%c0_14, %c0_15] : memref<8x8xbf16, #tpu.memory_space<vmem>>, vector<8x8xbf16>
    %cst_16 = arith.constant dense<0.000000e+00> : vector<8x256xf32>
    %25 = tpu.matmul %24, %15, %cst_16 {dimension_numbers = #tpu.dot_dimension_numbers<[1], [0], [0], [1], [0, 0, 1, 1], [], []>} : vector<8x8xbf16>, vector<8x256xbf16>, vector<8x256xf32> -> vector<8x256xf32>
    %c0_17 = arith.constant 0 : index
    %c0_18 = arith.constant 0 : index
    %26 = vector.load %arg8[%c0_17, %c0_18] : memref<8x1xf32, #tpu.memory_space<vmem>>, vector<8x1xf32>
    %27 = vector.broadcast %26 : vector<8x1xf32> to vector<8x256xf32>
    %28 = arith.addf %25, %27 : vector<8x256xf32>
    %cst_19 = arith.constant 0.000000e+00 : f32
    %29 = vector.broadcast %cst_19 : f32 to vector<8x256xf32>
    %30 = arith.maximumf %28, %29 : vector<8x256xf32>
    %31 = arith.truncf %23 : vector<8x256xf32> to vector<8x256xbf16>
    %c0_20 = arith.constant 0 : index
    %c0_21 = arith.constant 0 : index
    %c0_22 = arith.constant 0 : index
    %32 = vector.load %arg9[%c0_20, %c0_21, %c0_22] : memref<1x8x256xbf16, #tpu.memory_space<vmem>>, vector<1x8x256xbf16>
    %33 = vector.shape_cast %32 : vector<1x8x256xbf16> to vector<8x256xbf16>
    %34 = vector.shape_cast %31 : vector<8x256xbf16> to vector<1x8x256xbf16>
    tpu.vector_store %arg9[%c0_20, %c0_21, %c0_22], %34 {strides = array<i32>} : memref<1x8x256xbf16, #tpu.memory_space<vmem>>, vector<1x8x256xbf16>,
    %35 = arith.truncf %30 : vector<8x256xf32> to vector<8x256xbf16>
    %c0_23 = arith.constant 0 : index
    %c0_24 = arith.constant 0 : index
    %c0_25 = arith.constant 0 : index
    %36 = vector.load %arg10[%c0_23, %c0_24, %c0_25] : memref<1x8x256xbf16, #tpu.memory_space<vmem>>, vector<1x8x256xbf16>
    %37 = vector.shape_cast %36 : vector<1x8x256xbf16> to vector<8x256xbf16>
    %38 = vector.shape_cast %35 : vector<8x256xbf16> to vector<1x8x256xbf16>
    tpu.vector_store %arg10[%c0_23, %c0_24, %c0_25], %38 {strides = array<i32>} : memref<1x8x256xbf16, #tpu.memory_space<vmem>>, vector<1x8x256xbf16>,
    %39 = arith.truncf %16 : vector<8x256xf32> to vector<8x256xbf16>
    %c0_26 = arith.constant 0 : index
    %c0_27 = arith.constant 0 : index
    %c0_28 = arith.constant 0 : index
    %40 = vector.load %arg11[%c0_26, %c0_27, %c0_28] : memref<1x8x256xbf16, #tpu.memory_space<vmem>>, vector<1x8x256xbf16>
    %41 = vector.shape_cast %40 : vector<1x8x256xbf16> to vector<8x256xbf16>
    %42 = vector.shape_cast %39 : vector<8x256xbf16> to vector<1x8x256xbf16>
    tpu.vector_store %arg11[%c0_26, %c0_27, %c0_28], %42 {strides = array<i32>} : memref<1x8x256xbf16, #tpu.memory_space<vmem>>, vector<1x8x256xbf16>,
    return
  }
  func.func @transform_0(%arg0: i32, %arg1: i32) -> (i32, i32, i32) {
    %c0_i32 = arith.constant 0 : i32
    %c0_i32_0 = arith.constant 0 : i32
    return %arg0, %c0_i32, %arg1 : i32, i32, i32
  }
  func.func @transform_1(%arg0: i32, %arg1: i32) -> (i32, i32) {
    %c0_i32 = arith.constant 0 : i32
    %c0_i32_0 = arith.constant 0 : i32
    %c0_i32_1 = arith.constant 0 : i32
    return %c0_i32, %c0_i32_0 : i32, i32
  }
  func.func @transform_2(%arg0: i32, %arg1: i32) -> (i32, i32) {
    %c0_i32 = arith.constant 0 : i32
    %c0_i32_0 = arith.constant 0 : i32
    %c0_i32_1 = arith.constant 0 : i32
    return %c0_i32, %c0_i32_0 : i32, i32
  }
  func.func @transform_3(%arg0: i32, %arg1: i32) -> (i32, i32) {
    %c0_i32 = arith.constant 0 : i32
    %c0_i32_0 = arith.constant 0 : i32
    %c0_i32_1 = arith.constant 0 : i32
    return %c0_i32, %c0_i32_0 : i32, i32
  }
  func.func @transform_4(%arg0: i32, %arg1: i32) -> (i32, i32) {
    %c0_i32 = arith.constant 0 : i32
    %c0_i32_0 = arith.constant 0 : i32
    %c0_i32_1 = arith.constant 0 : i32
    return %c0_i32, %c0_i32_0 : i32, i32
  }
  func.func @transform_5(%arg0: i32, %arg1: i32) -> (i32, i32) {
    %c0_i32 = arith.constant 0 : i32
    %c0_i32_0 = arith.constant 0 : i32
    %c0_i32_1 = arith.constant 0 : i32
    return %c0_i32, %c0_i32_0 : i32, i32
  }
  func.func @transform_6(%arg0: i32, %arg1: i32) -> (i32, i32) {
    %c0_i32 = arith.constant 0 : i32
    %c0_i32_0 = arith.constant 0 : i32
    %c0_i32_1 = arith.constant 0 : i32
    return %c0_i32, %c0_i32_0 : i32, i32
  }
  func.func @transform_7(%arg0: i32, %arg1: i32) -> (i32, i32, i32) {
    %c0_i32 = arith.constant 0 : i32
    %c0_i32_0 = arith.constant 0 : i32
    return %arg0, %c0_i32, %arg1 : i32, i32, i32
  }
  func.func @transform_8(%arg0: i32, %arg1: i32) -> (i32, i32, i32) {
    %c0_i32 = arith.constant 0 : i32
    %c0_i32_0 = arith.constant 0 : i32
    return %arg0, %c0_i32, %arg1 : i32, i32, i32
  }
  func.func @transform_9(%arg0: i32, %arg1: i32) -> (i32, i32, i32) {
    %c0_i32 = arith.constant 0 : i32
    %c0_i32_0 = arith.constant 0 : i32
    return %arg0, %c0_i32, %arg1 : i32, i32, i32
  }
}

</mosaic_0001>

<llo_original>
// kernel: tpu_custom_call.1
$region0: #{tpu_custom_call.1}
  #allocation0 [shape = 'u32[]', space=smem, size = 0x4, offset = 0x4, fixed_abs, tag = 'smem constant byte address 0x4 - core index']
  #allocation1 [shape = 'u32[144,128]{1,0:T(1,128)}', space=vmem, size = 0x12000, scoped, tag = 'internal scratch']
  %s0 = inlined_call_operand.vmem [shape: f32[2,4,256], index: 0, kind: input, shape index: {}]
  %s1 = inlined_call_operand.vmem [shape: bf16[24,4], index: 1, kind: input, shape index: {}]
  %s2 = inlined_call_operand.vmem [shape: f32[24,1], index: 2, kind: input, shape index: {}]
  %s3 = inlined_call_operand.vmem [shape: bf16[8,8], index: 3, kind: input, shape index: {}]
  %s4 = inlined_call_operand.vmem [shape: f32[8,1], index: 4, kind: input, shape index: {}]
  %s5 = inlined_call_operand.vmem [shape: bf16[8,8], index: 5, kind: input, shape index: {}]
  %s6 = inlined_call_operand.vmem [shape: f32[8,1], index: 6, kind: input, shape index: {}]
  %s7 = inlined_call_operand.hbm [shape: bf16[2,8,256], index: 7, kind: output, shape index: {0}]
  %s8 = inlined_call_operand.hbm [shape: bf16[2,8,256], index: 8, kind: output, shape index: {1}]
  %s9 = inlined_call_operand.hbm [shape: bf16[2,8,256], index: 9, kind: output, shape index: {2}]
  %10 = xla_tuple %s7, %s8, %s9
  %s11 = sld [smem:[#allocation0]]
  $region77: #{tpu_custom_call.1} parent=0
    _
  %s13 = ssub.s32 1, %s11
  %s14 = scalar_select 0, %s13, %s11
  $region1: #{tpu_custom_call.1} parent=0
    #allocation2 [shape = 'u8[8192]{0}', space=vmem, size = 0x2000, scoped, tag = 'output window, operand 0']
    #allocation3 [shape = 's32[2]{0}', space=sflag, size = 0x8, scoped, tag = 'scoped memory for tpu_custom_call.1']
    #allocation4 [shape = 'u8[8192]{0}', space=vmem, size = 0x2000, scoped, tag = 'output window, operand 1']
    #allocation5 [shape = 's32[2]{0}', space=sflag, size = 0x8, scoped, tag = 'scoped memory for tpu_custom_call.1']
    #allocation6 [shape = 'u8[8192]{0}', space=vmem, size = 0x2000, scoped, tag = 'output window, operand 2']
    %15 = vsyncpa [#allocation3], 0
    %s16 = scalar_lea.sflag [#allocation3], 1
    %17 = vsyncpa %s16, 0
    %18 = vsyncpa [#allocation5], 0
    %s19 = scalar_lea.sflag [#allocation5], 1
    %20 = vsyncpa %s19, 0
    loop: start=0, step=1, limit=4
    $region2: #{tpu_custom_call.1} parent=1 // loop_pre_header
      _
    $region3: #{tpu_custom_call.1} parent=1 // loop_header
      %s22 = sphi 0, %s26
      %p23 = scmp.ge.s32.totalorder %s22, 4
      %s29 = sphi 0, %s41
      %s30 = sphi 0, %s37
      %s31 = sphi 0, %s29
      %s32 = sphi 0, %s30
      %s33 = sphi 0, %s31
      %s34 = sphi 0, %s32
      %s46 = sphi 0, %s48
      %s49 = sphi 0, %s46
      %s50 = sphi 0, %s49
      %s66 = sphi 0, %s50
      %s70 = sphi 0, %s70
      %s72 = sphi 0, %s70
      %s73 = sphi 0, %s72
      %s87 = sphi 0, %s73
      %s91 = sphi 0, %s91
      %s93 = sphi 0, %s91
      %s94 = sphi 0, %s93
      %s108 = sphi 0, %s94
      %s112 = sphi 0, %s112
      %s114 = sphi 0, %s112
      %s115 = sphi 0, %s114
      %s129 = sphi 0, %s115
      %s133 = sphi 0, %s133
      %s135 = sphi 0, %s133
      %s136 = sphi 0, %s135
      %s150 = sphi 0, %s136
      %s154 = sphi 0, %s154
      %s156 = sphi 0, %s154
      %s157 = sphi 0, %s156
      %s171 = sphi 0, %s157
      %s175 = sphi 0, %s175
      %s177 = sphi 0, %s175
      %s178 = sphi 0, %s177
      %s192 = sphi 0, %s178
      %s200 = sphi 0, %s202
      %s203 = sphi 0, %s200
      %s204 = sphi 0, %s203
      %s220 = sphi 0, %s204
      %s228 = sphi 0, %s230
      %s231 = sphi 0, %s228
      %s232 = sphi 0, %s231
      %s248 = sphi 0, %s232
      %s256 = sphi 0, %s258
      %s259 = sphi 0, %s256
      %s260 = sphi 0, %s259
      %s276 = sphi 0, %s260
    $region4: #{tpu_custom_call.1} parent=1 // loop_header_branch
      %25 = sbr.rel (%p23) target = $region8
    $region5: #{tpu_custom_call.1} parent=1 // loop_body
      %s27 = ssub.s32 %s22, 1
      %s28 = ssub.s32 %s22, 2
      %s35 = sadd.s32 1, %s30
      %p36 = scmp.ge.s32.totalorder %s35, 1
      %s37 = scalar_select %p36, 0, %s35
      %s38 = sadd.s32 1, %s29
      %s39 = scalar_select %p36, %s38, %s29
      %p40 = scmp.ge.s32.totalorder %s39, 2
      %s41 = scalar_select %p40, 0, %s39
      %s42 = ssub.s32 %s29, %s41
      %s43 = ssub.s32 %s30, %s37
      %s44 = sor.u32 %s42, %s43
      %p45 = scmp.eq.s32.totalorder %s44, 0
      %s47 = sadd.s32 %s46, 1
      %s48 = scalar_select %p45, %s46, %s47
      %p51 = pneg %p45
      %p52 = scmp.eq.s32.totalorder %s22, 1
      %p53 = por %p51, %p52
      %p54 = scmp.ne.s32.totalorder %s46, %s49
      %p55 = scmp.eq.s32.totalorder %s22, 0
      %p56 = por %p54, %p55
      %p57 = scmp.ne.s32.totalorder %s46, %s49
      %p58 = scmp.eq.s32.totalorder %s27, 1
      %p59 = por %p57, %p58
      %p60 = scmp.ne.s32.totalorder %s49, %s50
      %p61 = scmp.eq.s32.totalorder %s27, 0
      %p62 = por %p60, %p61
      %p63 = scmp.ne.s32.totalorder %s49, %s50
      %p64 = scmp.eq.s32.totalorder %s28, 1
      %p65 = por %p63, %p64
      %p67 = scmp.ne.s32.totalorder %s50, %s66
      %p68 = scmp.eq.s32.totalorder %s28, 0
      %p69 = por %p67, %p68
      %s71 = sadd.s32 %s70, 1
      %p74 = scmp.eq.s32.totalorder %s22, 1
      %p75 = scmp.ne.s32.totalorder %s70, %s72
      %p76 = scmp.eq.s32.totalorder %s22, 0
      %p77 = por %p75, %p76
      %p78 = scmp.ne.s32.totalorder %s70, %s72
      %p79 = scmp.eq.s32.totalorder %s27, 1
      %p80 = por %p78, %p79
      %p81 = scmp.ne.s32.totalorder %s72, %s73
      %p82 = scmp.eq.s32.totalorder %s27, 0
      %p83 = por %p81, %p82
      %p84 = scmp.ne.s32.totalorder %s72, %s73
      %p85 = scmp.eq.s32.totalorder %s28, 1
      %p86 = por %p84, %p85
      %p88 = scmp.ne.s32.totalorder %s73, %s87
      %p89 = scmp.eq.s32.totalorder %s28, 0
      %p90 = por %p88, %p89
      %s92 = sadd.s32 %s91, 1
      %p95 = scmp.eq.s32.totalorder %s22, 1
      %p96 = scmp.ne.s32.totalorder %s91, %s93
      %p97 = scmp.eq.s32.totalorder %s22, 0
      %p98 = por %p96, %p97
      %p99 = scmp.ne.s32.totalorder %s91, %s93
      %p100 = scmp.eq.s32.totalorder %s27, 1
      %p101 = por %p99, %p100
      %p102 = scmp.ne.s32.totalorder %s93, %s94
      %p103 = scmp.eq.s32.totalorder %s27, 0
      %p104 = por %p102, %p103
      %p105 = scmp.ne.s32.totalorder %s93, %s94
      %p106 = scmp.eq.s32.totalorder %s28, 1
      %p107 = por %p105, %p106
      %p109 = scmp.ne.s32.totalorder %s94, %s108
      %p110 = scmp.eq.s32.totalorder %s28, 0
      %p111 = por %p109, %p110
      %s113 = sadd.s32 %s112, 1
      %p116 = scmp.eq.s32.totalorder %s22, 1
      %p117 = scmp.ne.s32.totalorder %s112, %s114
      %p118 = scmp.eq.s32.totalorder %s22, 0
      %p119 = por %p117, %p118
      %p120 = scmp.ne.s32.totalorder %s112, %s114
      %p121 = scmp.eq.s32.totalorder %s27, 1
      %p122 = por %p120, %p121
      %p123 = scmp.ne.s32.totalorder %s114, %s115
      %p124 = scmp.eq.s32.totalorder %s27, 0
      %p125 = por %p123, %p124
      %p126 = scmp.ne.s32.totalorder %s114, %s115
      %p127 = scmp.eq.s32.totalorder %s28, 1
      %p128 = por %p126, %p127
      %p130 = scmp.ne.s32.totalorder %s115, %s129
      %p131 = scmp.eq.s32.totalorder %s28, 0
      %p132 = por %p130, %p131
      %s134 = sadd.s32 %s133, 1
      %p137 = scmp.eq.s32.totalorder %s22, 1
      %p138 = scmp.ne.s32.totalorder %s133, %s135
      %p139 = scmp.eq.s32.totalorder %s22, 0
      %p140 = por %p138, %p139
      %p141 = scmp.ne.s32.totalorder %s133, %s135
      %p142 = scmp.eq.s32.totalorder %s27, 1
      %p143 = por %p141, %p142
      %p144 = scmp.ne.s32.totalorder %s135, %s136
      %p145 = scmp.eq.s32.totalorder %s27, 0
      %p146 = por %p144, %p145
      %p147 = scmp.ne.s32.totalorder %s135, %s136
      %p148 = scmp.eq.s32.totalorder %s28, 1
      %p149 = por %p147, %p148
      %p151 = scmp.ne.s32.totalorder %s136, %s150
      %p152 = scmp.eq.s32.totalorder %s28, 0
      %p153 = por %p151, %p152
      %s155 = sadd.s32 %s154, 1
      %p158 = scmp.eq.s32.totalorder %s22, 1
      %p159 = scmp.ne.s32.totalorder %s154, %s156
      %p160 = scmp.eq.s32.totalorder %s22, 0
      %p161 = por %p159, %p160
      %p162 = scmp.ne.s32.totalorder %s154, %s156
      %p163 = scmp.eq.s32.totalorder %s27, 1
      %p164 = por %p162, %p163
      %p165 = scmp.ne.s32.totalorder %s156, %s157
      %p166 = scmp.eq.s32.totalorder %s27, 0
      %p167 = por %p165, %p166
      %p168 = scmp.ne.s32.totalorder %s156, %s157
      %p169 = scmp.eq.s32.totalorder %s28, 1
      %p170 = por %p168, %p169
      %p172 = scmp.ne.s32.totalorder %s157, %s171
      %p173 = scmp.eq.s32.totalorder %s28, 0
      %p174 = por %p172, %p173
      %s176 = sadd.s32 %s175, 1
      %p179 = scmp.eq.s32.totalorder %s22, 1
      %p180 = scmp.ne.s32.totalorder %s175, %s177
      %p181 = scmp.eq.s32.totalorder %s22, 0
      %p182 = por %p180, %p181
      %p183 = scmp.ne.s32.totalorder %s175, %s177
      %p184 = scmp.eq.s32.totalorder %s27, 1
      %p185 = por %p183, %p184
      %p186 = scmp.ne.s32.totalorder %s177, %s178
      %p187 = scmp.eq.s32.totalorder %s27, 0
      %p188 = por %p186, %p187
      %p189 = scmp.ne.s32.totalorder %s177, %s178
      %p190 = scmp.eq.s32.totalorder %s28, 1
      %p191 = por %p189, %p190
      %p193 = scmp.ne.s32.totalorder %s178, %s192
      %p194 = scmp.eq.s32.totalorder %s28, 0
      %p195 = por %p193, %p194
      %s196 = ssub.s32 %s29, %s41
      %s197 = ssub.s32 %s30, %s37
      %s198 = sor.u32 %s196, %s197
      %p199 = scmp.eq.s32.totalorder %s198, 0
      %s201 = sadd.s32 %s200, 1
      %s202 = scalar_select %p199, %s200, %s201
      %p205 = pneg %p199
      %p206 = scmp.eq.s32.totalorder %s22, 1
      %p207 = por %p205, %p206
      %p208 = scmp.ne.s32.totalorder %s200, %s203
      %p209 = scmp.eq.s32.totalorder %s22, 0
      %p210 = por %p208, %p209
      %p211 = scmp.ne.s32.totalorder %s200, %s203
      %p212 = scmp.eq.s32.totalorder %s27, 1
      %p213 = por %p211, %p212
      %p214 = scmp.ne.s32.totalorder %s203, %s204
      %p215 = scmp.eq.s32.totalorder %s27, 0
      %p216 = por %p214, %p215
      %p217 = scmp.ne.s32.totalorder %s203, %s204
      %p218 = scmp.eq.s32.totalorder %s28, 1
      %p219 = por %p217, %p218
      %p221 = scmp.ne.s32.totalorder %s204, %s220
      %p222 = scmp.eq.s32.totalorder %s28, 0
      %p223 = por %p221, %p222
      %s224 = ssub.s32 %s29, %s41
      %s225 = ssub.s32 %s30, %s37
      %s226 = sor.u32 %s224, %s225
      %p227 = scmp.eq.s32.totalorder %s226, 0
      %s229 = sadd.s32 %s228, 1
      %s230 = scalar_select %p227, %s228, %s229
      %p233 = pneg %p227
      %p234 = scmp.eq.s32.totalorder %s22, 1
      %p235 = por %p233, %p234
      %p236 = scmp.ne.s32.totalorder %s228, %s231
      %p237 = scmp.eq.s32.totalorder %s22, 0
      %p238 = por %p236, %p237
      %p239 = scmp.ne.s32.totalorder %s228, %s231
      %p240 = scmp.eq.s32.totalorder %s27, 1
      %p241 = por %p239, %p240
      %p242 = scmp.ne.s32.totalorder %s231, %s232
      %p243 = scmp.eq.s32.totalorder %s27, 0
      %p244 = por %p242, %p243
      %p245 = scmp.ne.s32.totalorder %s231, %s232
      %p246 = scmp.eq.s32.totalorder %s28, 1
      %p247 = por %p245, %p246
      %p249 = scmp.ne.s32.totalorder %s232, %s248
      %p250 = scmp.eq.s32.totalorder %s28, 0
      %p251 = por %p249, %p250
      %s252 = ssub.s32 %s29, %s41
      %s253 = ssub.s32 %s30, %s37
      %s254 = sor.u32 %s252, %s253
      %p255 = scmp.eq.s32.totalorder %s254, 0
      %s257 = sadd.s32 %s256, 1
      %s258 = scalar_select %p255, %s256, %s257
      %p261 = pneg %p255
      %p262 = scmp.eq.s32.totalorder %s22, 1
      %p263 = por %p261, %p262
      %p264 = scmp.ne.s32.totalorder %s256, %s259
      %p265 = scmp.eq.s32.totalorder %s22, 0
      %p266 = por %p264, %p265
      %p267 = scmp.ne.s32.totalorder %s256, %s259
      %p268 = scmp.eq.s32.totalorder %s27, 1
      %p269 = por %p267, %p268
      %p270 = scmp.ne.s32.totalorder %s259, %s260
      %p271 = scmp.eq.s32.totalorder %s27, 0
      %p272 = por %p270, %p271
      %p273 = scmp.ne.s32.totalorder %s259, %s260
      %p274 = scmp.eq.s32.totalorder %s28, 1
      %p275 = por %p273, %p274
      %p277 = scmp.ne.s32.totalorder %s260, %s276
      %p278 = scmp.eq.s32.totalorder %s28, 0
      %p279 = por %p277, %p278
      %p280 = scmp.le.s32.totalorder 1, %s22
      %p281 = scmp.lt.s32.totalorder %s22, 3
      %p282 = pnand %p280, %p281
      %p283 = pneg %p282
      // Predicated region
      $region9: #{tpu_custom_call.1} parent=5 // pred_check
        _
      $region10: #{tpu_custom_call.1} parent=5 // pred_check_branch
        %285 = sbr.rel (%p282) target = $region12
      $region11: #{tpu_custom_call.1} parent=5 // pred_region
        %s286 = ssub.s32 %s22, 1
        // Predicated region
        $region13: #{tpu_custom_call.1} parent=11 // pred_check
          %p287 = pneg %p83
        $region14: #{tpu_custom_call.1} parent=11 // pred_check_branch
          %289 = sbr.rel (%p287) target = $region16
        $region15: #{tpu_custom_call.1} parent=11 // pred_region
          _
        $region16: #{tpu_custom_call.1} parent=11 // pred_fallthru
          _
        // Predicated region
        $region17: #{tpu_custom_call.1} parent=11 // pred_check
          %p290 = pneg %p104
        $region18: #{tpu_custom_call.1} parent=11 // pred_check_branch
          %292 = sbr.rel (%p290) target = $region20
        $region19: #{tpu_custom_call.1} parent=11 // pred_region
          _
        $region20: #{tpu_custom_call.1} parent=11 // pred_fallthru
          _
        // Predicated region
        $region21: #{tpu_custom_call.1} parent=11 // pred_check
          %p293 = pneg %p125
        $region22: #{tpu_custom_call.1} parent=11 // pred_check_branch
          %295 = sbr.rel (%p293) target = $region24
        $region23: #{tpu_custom_call.1} parent=11 // pred_region
          _
        $region24: #{tpu_custom_call.1} parent=11 // pred_fallthru
          _
        // Predicated region
        $region25: #{tpu_custom_call.1} parent=11 // pred_check
          %p296 = pneg %p146
        $region26: #{tpu_custom_call.1} parent=11 // pred_check_branch
          %298 = sbr.rel (%p296) target = $region28
        $region27: #{tpu_custom_call.1} parent=11 // pred_region
          _
        $region28: #{tpu_custom_call.1} parent=11 // pred_fallthru
          _
        // Predicated region
        $region29: #{tpu_custom_call.1} parent=11 // pred_check
          %p299 = pneg %p167
        $region30: #{tpu_custom_call.1} parent=11 // pred_check_branch
          %301 = sbr.rel (%p299) target = $region32
        $region31: #{tpu_custom_call.1} parent=11 // pred_region
          _
        $region32: #{tpu_custom_call.1} parent=11 // pred_fallthru
          _
        // Predicated region
        $region33: #{tpu_custom_call.1} parent=11 // pred_check
          %p302 = pneg %p188
        $region34: #{tpu_custom_call.1} parent=11 // pred_check_branch
          %304 = sbr.rel (%p302) target = $region36
        $region35: #{tpu_custom_call.1} parent=11 // pred_region
          _
        $region36: #{tpu_custom_call.1} parent=11 // pred_fallthru
          _
      $region12: #{tpu_custom_call.1} parent=5 // pred_fallthru
        _
      %p305 = scmp.lt.s32.totalorder %s22, 2
      // Predicated region
      $region37: #{tpu_custom_call.1} parent=5 // pred_check
        %p306 = pneg %p305
      $region38: #{tpu_custom_call.1} parent=5 // pred_check_branch
        %308 = sbr.rel (%p306) target = $region40
      $region39: #{tpu_custom_call.1} parent=5 // pred_region
        // Predicated region
        $region41: #{tpu_custom_call.1} parent=39 // pred_check
          %p309 = pneg %p56
        $region42: #{tpu_custom_call.1} parent=39 // pred_check_branch
          %311 = sbr.rel (%p309) target = $region44
        $region43: #{tpu_custom_call.1} parent=39 // pred_region
          %s312 = smul.u32 2, %s30
          %p313 = scmp.lt.s32.totalorder %s29, 1
          %s314 = scalar_select %p313, %s29, 1
          %p315 = scmp.lt.s32.totalorder %s312, 1
          %s316 = scalar_select %p315, %s312, 1
          %s317 = smul.addr %s314, 2
          %s318 = sadd.s32 %s316, %s317
          %s319 = smul.addr %s318, 4
          %s320 = scalar_lea.vmem %s0, %s319
          %s321 = smul.u32 2, %s30
        $region44: #{tpu_custom_call.1} parent=39 // pred_fallthru
          _
      $region40: #{tpu_custom_call.1} parent=5 // pred_fallthru
        _
      %p322 = scmp.le.s32.totalorder 1, %s22
      %p323 = scmp.lt.s32.totalorder %s22, 3
      %p324 = pnand %p322, %p323
      %p325 = pneg %p324
      // Predicated region
      $region45: #{tpu_custom_call.1} parent=5 // pred_check
        _
      $region46: #{tpu_custom_call.1} parent=5 // pred_check_branch
        %327 = sbr.rel (%p324) target = $region48
      $region47: #{tpu_custom_call.1} parent=5 // pred_region
        %s328 = ssub.s32 %s22, 1
        %s329 = smul.u32 2, %s32
        %p330 = scmp.lt.s32.totalorder %s31, 1
        %s331 = scalar_select %p330, %s31, 1
        %p332 = scmp.lt.s32.totalorder %s329, 1
        %s333 = scalar_select %p332, %s329, 1
        %s334 = smul.addr %s331, 2
        %s335 = sadd.s32 %s333, %s334
        %s336 = smul.addr %s335, 4
        %s337 = scalar_lea.vmem %s0, %s336
        %p338 = pneg %p62
        %p339 = pneg %p59
        %p340 = pneg %p83
        %p341 = pneg %p80
        %p342 = pneg %p104
        %p343 = pneg %p101
        %p344 = pneg %p125
        %p345 = pneg %p122
        %p346 = pneg %p146
        %p347 = pneg %p143
        %p348 = pneg %p167
        %p349 = pneg %p164
        %p350 = pneg %p188
        %p351 = pneg %p185
        %p352 = pneg %p216
        %p353 = pneg %p213
        %s354 = sand.u32 %s203, 1
        %s355 = scalar_lea.sflag [#allocation3], %s354
        %s356 = sand.u32 %s203, 1
        %s357 = smul.addr %s356, 8
        %s358 = scalar_lea.vmem [#allocation2], %s357
        %p359 = pneg %p244
        %p360 = pneg %p241
        %s361 = sand.u32 %s27, 1
        %s362 = scalar_lea.sflag [#allocation5], %s361
        %s363 = sand.u32 %s231, 1
        %s364 = smul.addr %s363, 8
        %s365 = scalar_lea.vmem [#allocation4], %s364
        %p366 = pneg %p272
        %p367 = pneg %p269
        %s368 = sand.u32 %s27, 1
        %s369 = scalar_lea.sflag [#allocation5], %s368
        %s370 = sand.u32 %s259, 1
        %s371 = smul.addr %s370, 8
        %s372 = scalar_lea.vmem [#allocation6], %s371
        %s373 = smul.u32 2, %s32
        %p374 = scmp.lt.s32.totalorder %s31, 1
        %s375 = scalar_select %p374, %s31, 1
        %p376 = scmp.lt.s32.totalorder %s373, 1
        %s377 = scalar_select %p376, %s373, 1
        %s378 = smul.addr %s375, 2
        %s379 = sadd.s32 %s377, %s378
        %s380 = smul.addr %s379, 4
        %s381 = scalar_lea.vmem %s0, %s380
        %s382 = smul.u32 2, %s32
        %s383 = smul.u32 2, %s32
        %s384 = smul.u32 2, %s32
        %s385 = smul.u32 2, %s32
        %v387 = vld [vmem:[%s381] sm:$0xff]
        %v389 = vcombine.high %v387, %v387
        %v391 = vpack.c.bf16 %v387, %v387
        %v392 = vpack.c.bf16 %v389, %v389
        %v393 = vld [vmem:[%s1] sm:$0xf]
        %v394 = vld [vmem:[%s1 + $0x4] sm:$0xf]
        %v395 = vld [vmem:[%s1 + $0x8] sm:$0xf]
        %v396 = vld [vmem:[%s2] sm:$0xff]
        %v397 = vld [vmem:[%s2 + $0x8] sm:$0xff]
        %v398 = vld [vmem:[%s2 + $0x10] sm:$0xff]
        %400 = vset.pattern.permute.xlu0 0
        %401 = vperm.xlu0 %400, %v396
        %v402 = vpop.permute.xlu0 %401
        %405 = vset.pattern.permute.xlu0 0
        %406 = vperm.xlu0 %405, %v397
        %v407 = vpop.permute.xlu0 %406
        %410 = vset.pattern.permute.xlu0 0
        %411 = vperm.xlu0 %410, %v398
        %v412 = vpop.permute.xlu0 %411
        %v417 = vunpack.c.l.b16 %v393
        %v418 = vunpack.c.l.b16 %v394
        %v419 = vunpack.c.l.b16 %v395
        %v420 = vpack.c.b16 %v418, %v417
        %v421 = vpack.c.b16 %v419, %v419
        %vm422 = vcmask 31744
        %v424 = vsel %vm422, %v420, 0
        %v427 = vsel %vm422, %v421, 0
        %vm429 = vcmask 1041408
        %v431 = vsel %vm429, %v391, 0
        %v434 = vsel %vm429, %v392, 0
        %436 = vmatprep.subr.bf16.mxu0 0
        %437 = vmatpush1.bf16.msra.mxu0 0
        %438 = vmatprep.subr.bf16.mxu0 0
        %439 = vmatpush1.bf16.msra.mxu0 0
        %440 = vmatprep.subr.bf16.mxu0 0
        %441 = vmatpush1.bf16.msra.mxu0 0
        %442 = vmatprep.subr.bf16.mxu0 0
        %443 = vmatpush1.bf16.msra.mxu0 0
        %444 = vmatprep.subr.bf16.mxu0 0
        %445 = vmatpush1.bf16.msra.mxu0 0
        %446 = vmatprep.subr.bf16.mxu0 0
        %447 = vmatpush1.bf16.msra.mxu0 0
        %448 = vmatprep.subr.bf16.mxu0 0
        %449 = vmatpush1.bf16.msra.mxu0 0
        %450 = vmatprep.subr.bf16.mxu0 %v434
        %451 = vmatpush1.bf16.msra.mxu0 %v431
        %452 = vmatprep.subr.bf16.mxu0 0
        %453 = vmatpush2.bf16.msra.mxu0 0
        %454 = vmatprep.subr.bf16.mxu0 0
        %455 = vmatpush2.bf16.msra.mxu0 0
        %456 = vmatprep.subr.bf16.mxu0 0
        %457 = vmatpush2.bf16.msra.mxu0 0
        %458 = vmatprep.subr.bf16.mxu0 0
        %459 = vmatpush2.bf16.msra.mxu0 0
        %460 = vmatprep.subr.bf16.mxu0 0
        %461 = vmatpush2.bf16.msra.mxu0 0
        %462 = vmatprep.subr.bf16.mxu0 0
        %463 = vmatpush2.bf16.msra.mxu0 0
        %464 = vmatprep.subr.bf16.mxu0 0
        %465 = vmatpush2.bf16.msra.mxu0 0
        %466 = vmatprep.subr.bf16.mxu0 0
        %467 = vmatpush2.bf16.msra.mxu0 0
        %468 = vmatprep.mubr.bf16.mxu0 0
        %469 = vmatmul.mubr.bf16.gmra.mxu0 %v424
        %v470 = vpop.f32.mrf.mxu0
        %v471 = vadd.f32 %v402, %v470
        %v472 = vpop.f32.mrf.mxu0
        %v473 = vadd.f32 %v402, %v472
        %v474 = vpop.f32.mrf.mxu0
        %v475 = vadd.f32 %v407, %v474
        %v476 = vpop.f32.mrf.mxu0
        %v477 = vadd.f32 %v407, %v476
        %478 = vmatprep.mubr.bf16.mxu0 0
        %479 = vmatmul.mubr.bf16.gmra.mxu0 %v427
        %v480 = vpop.f32.mrf.mxu0
        %v481 = vadd.f32 %v412, %v480
        %v482 = vpop.f32.mrf.mxu0
        %v483 = vadd.f32 %v412, %v482
        %v484 = vpop.f32.mrf.mxu0
        %v485 = vpop.f32.mrf.mxu0
        %486 = vdwg.mxu0
        %v487 = vmax.f32 %v471, 0.0
        %v488 = vmax.f32 %v473, 0.0
        %v489 = vpack.c.bf16 %v487, %v487
        %v490 = vpack.c.bf16 %v488, %v488
        %v491 = vmax.f32 %v475, 0.0
        %v492 = vmax.f32 %v477, 0.0
        %v493 = vpack.c.bf16 %v491, %v491
        %v494 = vpack.c.bf16 %v492, %v492
        %v495 = vld [vmem:[%s3] sm:$0xf]
        %v496 = vld [vmem:[%s4] sm:$0xff]
        %498 = vset.pattern.permute.xlu0 0
        %499 = vperm.xlu0 %498, %v496
        %v500 = vpop.permute.xlu0 %499
        %vm502 = vcmask 64512
        %v504 = vsel %vm502, %v495, 0
        %vm506 = vcmask 1043456
        %v508 = vsel %vm506, %v489, 0
        %v511 = vsel %vm506, %v490, 0
        %513 = vmatprep.subr.bf16.mxu0 0
        %514 = vmatpush1.bf16.msra.mxu0 0
        %515 = vmatprep.subr.bf16.mxu0 0
        %516 = vmatpush1.bf16.msra.mxu0 0
        %517 = vmatprep.subr.bf16.mxu0 0
        %518 = vmatpush1.bf16.msra.mxu0 0
        %519 = vmatprep.subr.bf16.mxu0 0
        %520 = vmatpush1.bf16.msra.mxu0 0
        %521 = vmatprep.subr.bf16.mxu0 0
        %522 = vmatpush1.bf16.msra.mxu0 0
        %523 = vmatprep.subr.bf16.mxu0 0
        %524 = vmatpush1.bf16.msra.mxu0 0
        %525 = vmatprep.subr.bf16.mxu0 0
        %526 = vmatpush1.bf16.msra.mxu0 0
        %527 = vmatprep.subr.bf16.mxu0 %v511
        %528 = vmatpush1.bf16.msra.mxu0 %v508
        %529 = vmatprep.subr.bf16.mxu0 0
        %530 = vmatpush2.bf16.msra.mxu0 0
        %531 = vmatprep.subr.bf16.mxu0 0
        %532 = vmatpush2.bf16.msra.mxu0 0
        %533 = vmatprep.subr.bf16.mxu0 0
        %534 = vmatpush2.bf16.msra.mxu0 0
        %535 = vmatprep.subr.bf16.mxu0 0
        %536 = vmatpush2.bf16.msra.mxu0 0
        %537 = vmatprep.subr.bf16.mxu0 0
        %538 = vmatpush2.bf16.msra.mxu0 0
        %539 = vmatprep.subr.bf16.mxu0 0
        %540 = vmatpush2.bf16.msra.mxu0 0
        %541 = vmatprep.subr.bf16.mxu0 0
        %542 = vmatpush2.bf16.msra.mxu0 0
        %543 = vmatprep.subr.bf16.mxu0 0
        %544 = vmatpush2.bf16.msra.mxu0 0
        %545 = vmatprep.mubr.bf16.mxu0 0
        %546 = vmatmul.mubr.bf16.gmra.mxu0 %v504
        %v547 = vpop.f32.mrf.mxu0
        %v548 = vadd.f32 %v500, %v547
        %v549 = vpop.f32.mrf.mxu0
        %v550 = vadd.f32 %v500, %v549
        %v551 = vpop.f32.mrf.mxu0
        %v552 = vpop.f32.mrf.mxu0
        %553 = vdwg.mxu0
        %v554 = vmax.f32 %v548, 0.0
        %v555 = vmax.f32 %v550, 0.0
        %v556 = vld [vmem:[%s5] sm:$0xf]
        %v557 = vld [vmem:[%s6] sm:$0xff]
        %559 = vset.pattern.permute.xlu0 0
        %560 = vperm.xlu0 %559, %v557
        %v561 = vpop.permute.xlu0 %560
        %v564 = vsel %vm502, %v556, 0
        %v567 = vsel %vm506, %v493, 0
        %v570 = vsel %vm506, %v494, 0
        %572 = vmatprep.subr.bf16.mxu0 0
        %573 = vmatpush1.bf16.msra.mxu0 0
        %574 = vmatprep.subr.bf16.mxu0 0
        %575 = vmatpush1.bf16.msra.mxu0 0
        %576 = vmatprep.subr.bf16.mxu0 0
        %577 = vmatpush1.bf16.msra.mxu0 0
        %578 = vmatprep.subr.bf16.mxu0 0
        %579 = vmatpush1.bf16.msra.mxu0 0
        %580 = vmatprep.subr.bf16.mxu0 0
        %581 = vmatpush1.bf16.msra.mxu0 0
        %582 = vmatprep.subr.bf16.mxu0 0
        %583 = vmatpush1.bf16.msra.mxu0 0
        %584 = vmatprep.subr.bf16.mxu0 0
        %585 = vmatpush1.bf16.msra.mxu0 0
        %586 = vmatprep.subr.bf16.mxu0 %v570
        %587 = vmatpush1.bf16.msra.mxu0 %v567
        %588 = vmatprep.subr.bf16.mxu0 0
        %589 = vmatpush2.bf16.msra.mxu0 0
        %590 = vmatprep.subr.bf16.mxu0 0
        %591 = vmatpush2.bf16.msra.mxu0 0
        %592 = vmatprep.subr.bf16.mxu0 0
        %593 = vmatpush2.bf16.msra.mxu0 0
        %594 = vmatprep.subr.bf16.mxu0 0
        %595 = vmatpush2.bf16.msra.mxu0 0
        %596 = vmatprep.subr.bf16.mxu0 0
        %597 = vmatpush2.bf16.msra.mxu0 0
        %598 = vmatprep.subr.bf16.mxu0 0
        %599 = vmatpush2.bf16.msra.mxu0 0
        %600 = vmatprep.subr.bf16.mxu0 0
        %601 = vmatpush2.bf16.msra.mxu0 0
        %602 = vmatprep.subr.bf16.mxu0 0
        %603 = vmatpush2.bf16.msra.mxu0 0
        %604 = vmatprep.mubr.bf16.mxu0 0
        %605 = vmatmul.mubr.bf16.gmra.mxu0 %v564
        %v606 = vpop.f32.mrf.mxu0
        %v607 = vadd.f32 %v561, %v606
        %v608 = vpop.f32.mrf.mxu0
        %v609 = vadd.f32 %v561, %v608
        %v610 = vpop.f32.mrf.mxu0
        %v611 = vpop.f32.mrf.mxu0
        %612 = vdwg.mxu0
        %v613 = vmax.f32 %v607, 0.0
        %v614 = vmax.f32 %v609, 0.0
        %v615 = vpack.c.bf16 %v554, %v554
        %v616 = vpack.c.bf16 %v555, %v555
        %v619 = vunpack.c.l.b16 %v615
        %v620 = vunpack.c.l.b16 %v616
        %v621 = vpack.c.b16 %v620, %v619
        %623 = vst [vmem:[%s358] sm:$0xff] %v621
        %v624 = vpack.c.bf16 %v613, %v613
        %v625 = vpack.c.bf16 %v614, %v614
        %v628 = vunpack.c.l.b16 %v624
        %v629 = vunpack.c.l.b16 %v625
        %v630 = vpack.c.b16 %v629, %v628
        %632 = vst [vmem:[%s365] sm:$0xff] %v630
        %v633 = vpack.c.bf16 %v481, %v481
        %v634 = vpack.c.bf16 %v483, %v483
        %v637 = vunpack.c.l.b16 %v633
        %v638 = vunpack.c.l.b16 %v634
        %v639 = vpack.c.b16 %v638, %v637
        %641 = vst [vmem:[%s372] sm:$0xff] %v639
        %s642 = sand.u32 %s203, 1
        %s643 = scalar_lea.sflag [#allocation3], %s642
        %s644 = sand.u32 %s203, 1
        %s645 = smul.addr %s644, 8
        %s646 = scalar_lea.vmem [#allocation2], %s645
        %s647 = sand.u32 %s27, 1
        %s648 = scalar_lea.sflag [#allocation5], %s647
        %s649 = sand.u32 %s231, 1
        %s650 = smul.addr %s649, 8
        %s651 = scalar_lea.vmem [#allocation4], %s650
        %s652 = sand.u32 %s27, 1
        %s653 = scalar_lea.sflag [#allocation5], %s652
        %s654 = sand.u32 %s259, 1
        %s655 = smul.addr %s654, 8
        %s656 = scalar_lea.vmem [#allocation6], %s655
        // Predicated region
        $region49: #{tpu_custom_call.1} parent=47 // pred_check
          %p657 = pneg %p213
        $region50: #{tpu_custom_call.1} parent=47 // pred_check_branch
          %659 = sbr.rel (%p657) target = $region52
        $region51: #{tpu_custom_call.1} parent=47 // pred_region
          %s660 = smul.u32 2, %s32
          %s662 = ssub.s32 128, 128
          %663 = vsyncadd %s643, %s662
          %s664 = smul.addr %s31, 2
          %s665 = sadd.s32 %s660, %s664
          %s666 = smul.addr %s665, 64
          %s667 = scalar_lea.hbm %s7, %s666
          %s669 = sshll.u32 %s646, 4
          %s670 = int_to_ptr.vmem [resolvable:$true] %s669
          %672 = dma.vmem_to_hbm [thread:$0]  %s670, 128, %s667, %s643
        $region52: #{tpu_custom_call.1} parent=47 // pred_fallthru
          _
        // Predicated region
        $region53: #{tpu_custom_call.1} parent=47 // pred_check
          %p673 = pneg %p241
        $region54: #{tpu_custom_call.1} parent=47 // pred_check_branch
          %675 = sbr.rel (%p673) target = $region56
        $region55: #{tpu_custom_call.1} parent=47 // pred_region
          %s676 = smul.u32 2, %s32
          %s678 = ssub.s32 128, 128
          %679 = vsyncadd %s648, %s678
          %s680 = smul.addr %s31, 2
          %s681 = sadd.s32 %s676, %s680
          %s682 = smul.addr %s681, 64
          %s683 = scalar_lea.hbm %s8, %s682
          %s685 = sshll.u32 %s651, 4
          %s686 = int_to_ptr.vmem [resolvable:$true] %s685
          %688 = dma.vmem_to_hbm [thread:$0]  %s686, 128, %s683, %s648
        $region56: #{tpu_custom_call.1} parent=47 // pred_fallthru
          _
        // Predicated region
        $region57: #{tpu_custom_call.1} parent=47 // pred_check
          %p689 = pneg %p269
        $region58: #{tpu_custom_call.1} parent=47 // pred_check_branch
          %691 = sbr.rel (%p689) target = $region60
        $region59: #{tpu_custom_call.1} parent=47 // pred_region
          %s692 = smul.u32 2, %s32
          %s694 = ssub.s32 128, 128
          %695 = vsyncadd %s653, %s694
          %s696 = smul.addr %s31, 2
          %s697 = sadd.s32 %s692, %s696
          %s698 = smul.addr %s697, 64
          %s699 = scalar_lea.hbm %s9, %s698
          %s701 = sshll.u32 %s656, 4
          %s702 = int_to_ptr.vmem [resolvable:$true] %s701
          %704 = dma.vmem_to_hbm [thread:$0]  %s702, 128, %s699, %s653
        $region60: #{tpu_custom_call.1} parent=47 // pred_fallthru
          _
      $region48: #{tpu_custom_call.1} parent=5 // pred_fallthru
        _
      %p705 = scmp.le.s32.totalorder 2, %s22
      // Predicated region
      $region61: #{tpu_custom_call.1} parent=5 // pred_check
        %p706 = pneg %p705
      $region62: #{tpu_custom_call.1} parent=5 // pred_check_branch
        %708 = sbr.rel (%p706) target = $region64
      $region63: #{tpu_custom_call.1} parent=5 // pred_region
        %s709 = ssub.s32 %s22, 2
        // Predicated region
        $region65: #{tpu_custom_call.1} parent=63 // pred_check
          %p710 = pneg %p219
        $region66: #{tpu_custom_call.1} parent=63 // pred_check_branch
          %712 = sbr.rel (%p710) target = $region68
        $region67: #{tpu_custom_call.1} parent=63 // pred_region
          %s713 = sand.u32 %s204, 1
          %s714 = scalar_lea.sflag [#allocation3], %s713
          %s715 = sand.u32 %s204, 1
          %s716 = smul.addr %s715, 8
          %s717 = scalar_lea.vmem [#allocation2], %s716
          %718 = dma.done %s714, 128
        $region68: #{tpu_custom_call.1} parent=63 // pred_fallthru
          _
        // Predicated region
        $region69: #{tpu_custom_call.1} parent=63 // pred_check
          %p719 = pneg %p247
        $region70: #{tpu_custom_call.1} parent=63 // pred_check_branch
          %721 = sbr.rel (%p719) target = $region72
        $region71: #{tpu_custom_call.1} parent=63 // pred_region
          %s722 = sand.u32 %s28, 1
          %s723 = scalar_lea.sflag [#allocation5], %s722
          %s724 = sand.u32 %s232, 1
          %s725 = smul.addr %s724, 8
          %s726 = scalar_lea.vmem [#allocation4], %s725
          %727 = dma.done %s723, 128
        $region72: #{tpu_custom_call.1} parent=63 // pred_fallthru
          _
        // Predicated region
        $region73: #{tpu_custom_call.1} parent=63 // pred_check
          %p728 = pneg %p275
        $region74: #{tpu_custom_call.1} parent=63 // pred_check_branch
          %730 = sbr.rel (%p728) target = $region76
        $region75: #{tpu_custom_call.1} parent=63 // pred_region
          %s731 = sand.u32 %s28, 1
          %s732 = scalar_lea.sflag [#allocation5], %s731
          %s733 = sand.u32 %s260, 1
          %s734 = smul.addr %s733, 8
          %s735 = scalar_lea.vmem [#allocation6], %s734
          %736 = dma.done %s732, 128
        $region76: #{tpu_custom_call.1} parent=63 // pred_fallthru
          _
      $region64: #{tpu_custom_call.1} parent=5 // pred_fallthru
        _
    $region6: #{tpu_custom_call.1} parent=1 // loop_footer
      %s26 = sadd.s32 1, %s22
    $region7: #{tpu_custom_call.1} parent=1 // loop_footer_branch
      %21 = sbr.rel target = $region3
    $region8: #{tpu_custom_call.1} parent=1 // loop_exit
      _
    %737 = vsyncpa [#allocation3], 1
    %s738 = scalar_lea.sflag [#allocation3], 1
    %739 = vsyncpa %s738, 1
    %740 = vsyncpa [#allocation5], 1
    %s741 = scalar_lea.sflag [#allocation5], 1
    %742 = vsyncpa %s741, 1

</llo_original>
